<compile_context>
chip_gen: v5e
topology: v5e:2x2
jax: 0.10.0
libtpu: 0.0.40
codegen_flags: <defaults>
</compile_context>

<pallas_src>
import jax
import jax.numpy as jnp
from jax.experimental import pallas as pl
from jax.experimental.pallas import tpu as pltpu


# ----------------------------------------------------------------------------
# Kernel
# ----------------------------------------------------------------------------
def _feat_enc_kernel(x_ref, w1_ref, b1_ref, w2_ref, b2_ref, o_ref):
    # x_ref : (tm, F)  tile of flattened input rows (native dtype)
    # w*_ref: (F, F)   weights pre-transposed to (in, out), native dtype
    # b*_ref: (1, F)   biases, f32
    # o_ref : (tm, F)
    x = x_ref[...]

    h = jnp.dot(x, w1_ref[...], preferred_element_type=jnp.float32)
    h = jnp.maximum(h + b1_ref[...], 0.0)            # Linear + ReLU (f32)
    # Keep the second dot on the fast MXU path when params are bf16;
    # no-op for f32 params.
    h = h.astype(w2_ref.dtype)

    y = jnp.dot(h, w2_ref[...], preferred_element_type=jnp.float32)
    y = jnp.maximum(y + b2_ref[...], 0.0)            # Linear + ReLU

    o_ref[...] = y.astype(o_ref.dtype)


# ----------------------------------------------------------------------------
# Helpers
# ----------------------------------------------------------------------------
def _round_up(x, m):
    return (x + m - 1) // m * m


def _hw_vmem_capacity_bytes():
    """Physical VMEM per TensorCore; conservative default if the query fails."""
    try:
        return int(pltpu.get_tpu_info().vmem_capacity_bytes)
    except Exception:
        return 64 * 1024 * 1024  # v7x-sized, the tightest generation


def _num_tensorcores_per_chip():
    """Best-effort TC-per-device count (2 on v7x).  Falls back to 1."""
    try:
        dev = jax.devices()[0]
        return max(1, int(getattr(dev, "num_cores", 1) or 1))
    except Exception:
        return 1


def _choose_tm(m_rows, feat, x_bytes, out_bytes, w_bytes, row_align,
               vmem_budget, weight_bufs, num_tc):
    """Largest row tile (multiple of row_align) fitting the VMEM budget.

    Cap is 1024 for small feature dims (amortizes the ~0.35us grid-step
    overhead), 512 otherwise.  Only split into >=2 grid steps when the chip
    actually has more than one TensorCore to shard the parallel axis onto.
    """

    def usage(t):
        return (2 * t * feat * x_bytes                 # x  double buffer
                + 2 * t * feat * out_bytes             # out double buffer
                + weight_bufs * 2 * feat * feat * w_bytes   # two (F,F) weights
                + weight_bufs * 2 * feat * 4           # two (1,F) f32 biases
                + 2 * t * feat * 4)                    # f32 intermediates

    cap = 1024 if feat <= 256 else 512
    tm = cap
    while tm > row_align and usage(tm) > vmem_budget:
        tm //= 2
    tm = max(row_align, _round_up(tm, row_align))
    # Don't make the tile taller than the (row-aligned) problem.
    tm = min(tm, _round_up(m_rows, row_align))
    # Prefer >= 2 grid steps only when a second TensorCore can take the work
    # (v7x); on single-TC chips the grid is a serial loop and splitting just
    # adds per-step overhead.
    if num_tc > 1 and pl.cdiv(m_rows, tm) < 2 and m_rows > row_align:
        tm = max(row_align, _round_up(pl.cdiv(m_rows, 2), row_align))
    return tm


def _resident_spec(shape, weight_bytes):
    """BlockSpec for a grid-invariant operand (constant index_map).

    For large operands, request a single VMEM buffer (no revolving buffer is
    needed since the block never changes) to halve resident weight footprint.
    Kept behind a size gate + feature check so small problems never depend on
    the pipeline_mode extension.
    """
    if weight_bytes >= (2 << 20) and hasattr(pl, "Buffered"):
        try:
            return pl.BlockSpec(shape, lambda i: (0, 0),
                                pipeline_mode=pl.Buffered(1))
        except TypeError:
            pass
    return pl.BlockSpec(shape, lambda i: (0, 0))


# ----------------------------------------------------------------------------
# Parameter preparation (hoisted out of the per-call forward path)
# ----------------------------------------------------------------------------
def prepare_clenc_params(w1, b1, w2, b2, param_dtype=None):
    """One-time preparation of feat_enc parameters.

    w1, w2: (F, F) PyTorch-style Linear weights (out, in)
    b1, b2: (F,)
    param_dtype: optionally cast weights (e.g. jnp.bfloat16) for the fast MXU
        path; biases stay f32 (bias-add / ReLU run in f32 inside the kernel).
    Returns (w1_t, b1_2d, w2_t, b2_2d) ready for cl_enc_forward.
    """
    feat = w1.shape[0]
    w1_t = jnp.asarray(w1).T            # (in, out) so kernel does plain x @ W
    w2_t = jnp.asarray(w2).T
    if param_dtype is not None:
        w1_t = w1_t.astype(param_dtype)
        w2_t = w2_t.astype(param_dtype)
    b1_2d = jnp.asarray(b1).reshape(1, feat).astype(jnp.float32)
    b2_2d = jnp.asarray(b2).reshape(1, feat).astype(jnp.float32)
    return w1_t, b1_2d, w2_t, b2_2d


# ----------------------------------------------------------------------------
# Forward
# ----------------------------------------------------------------------------
def cl_enc_forward(rgb_features, params, *, tm=None):
    """Pallas implementation of CLEnc.forward (== feat_enc MLP).

    rgb_features: ... x F (any leading shape)
    params: output of prepare_clenc_params(w1, b1, w2, b2)
    """
    w1_t, b1_2d, w2_t, b2_2d = params
    feat_size = rgb_features.shape[-1]
    assert w1_t.shape == (feat_size, feat_size)

    lead_shape = rgb_features.shape[:-1]
    x2d = rgb_features.reshape(-1, feat_size)   # free for contiguous input
    M = x2d.shape[0]

    x_bytes = x2d.dtype.itemsize
    out_bytes = x_bytes
    w_bytes = w1_t.dtype.itemsize
    row_align = {4: 8, 2: 16, 1: 32}.get(x_bytes, 8)

    weight_bytes_each = feat_size * feat_size * w_bytes
    weight_bufs = 1 if weight_bytes_each >= (2 << 20) else 2

    vmem_cap = _hw_vmem_capacity_bytes()
    vmem_budget = int(vmem_cap * 0.45)          # ~28 MiB on v7x, ~57 MiB on v5e/v6e
    vmem_limit = min(int(vmem_cap * 0.75), 128 * 1024 * 1024)

    if tm is None:
        tm = _choose_tm(M, feat_size, x_bytes, out_bytes, w_bytes, row_align,
                        vmem_budget, weight_bufs, _num_tensorcores_per_chip())
    # TODO(synk): for feat_size large enough that the two (F,F) weights exceed
    # ~half the VMEM budget even single-buffered, add a K grid axis
    # ("arbitrary", last) with a VMEM f32 accumulator instead of holding the
    # full weights resident.

    grid = (pl.cdiv(M, tm),)   # last block may be partial; rows are independent

    cost = pl.CostEstimate(
        flops=2 * 2 * M * feat_size * feat_size,
        transcendentals=0,
        bytes_accessed=(M * feat_size * x_bytes            # x read
                        + M * feat_size * out_bytes        # out write
                        + 2 * feat_size * feat_size * w_bytes   # weights
                        + 2 * feat_size * 4),              # biases
    )

    out = pl.pallas_call(
        _feat_enc_kernel,
        out_shape=jax.ShapeDtypeStruct((M, feat_size), rgb_features.dtype),
        grid_spec=pltpu.PrefetchScalarGridSpec(
            num_scalar_prefetch=0,
            grid=grid,
            in_specs=[
                pl.BlockSpec((tm, feat_size), lambda i: (i, 0)),      # x tile
                _resident_spec((feat_size, feat_size), weight_bytes_each),  # W1^T
                _resident_spec((1, feat_size), 0),                    # b1
                _resident_spec((feat_size, feat_size), weight_bytes_each),  # W2^T
                _resident_spec((1, feat_size), 0),                    # b2
            ],
            out_specs=pl.BlockSpec((tm, feat_size), lambda i: (i, 0)),
        ),
        compiler_params=pltpu.CompilerParams(
            dimension_semantics=("parallel",),
            vmem_limit_bytes=vmem_limit),
        cost_estimate=cost,
    )(x2d, w1_t, b1_2d, w2_t, b2_2d)

    return out.reshape(*lead_shape, feat_size)


# ----------------------------------------------------------------------------
# Reference + self-test
# ----------------------------------------------------------------------------
def _ref_forward(x, w1, b1, w2, b2):
    """Pure-JAX reference matching nn.Sequential(Linear, ReLU, Linear, ReLU)."""
    h = jnp.maximum(x @ w1.T + b1, 0.0)
    return jnp.maximum(h @ w2.T + b2, 0.0)


if __name__ == "__main__":
    key = jax.random.PRNGKey(0)
    k_x, k_w1, k_b1, k_w2, k_b2, k_x2 = jax.random.split(key, 6)

    feat_size = 32
    batch, seq = 2, 8  # rgb_features: ... x feat_size  ->  (2, 8, 32)

    rgb_features = jax.random.normal(k_x, (batch, seq, feat_size), jnp.float32)

    # Deterministic synthetic parameters (PyTorch Linear shapes: (out, in) / (out,)).
    bound = 1.0 / jnp.sqrt(feat_size)
    w1 = jax.random.uniform(k_w1, (feat_size, feat_size), jnp.float32, -bound, bound)
    b1 = jax.random.uniform(k_b1, (feat_size,), jnp.float32, -bound, bound)
    w2 = jax.random.uniform(k_w2, (feat_size, feat_size), jnp.float32, -bound, bound)
    b2 = jax.random.uniform(k_b2, (feat_size,), jnp.float32, -bound, bound)

    # Prepare params ONCE (hoisted out of the hot path), reuse across calls.
    params = prepare_clenc_params(w1, b1, w2, b2)

    out = cl_enc_forward(rgb_features, params)
    out = jax.block_until_ready(out)
    ref = _ref_forward(rgb_features, w1, b1, w2, b2)
    assert out.shape == rgb_features.shape
    assert jnp.allclose(out, ref, atol=1e-5, rtol=1e-5), "mismatch vs reference"

    # Second check: row count not a multiple of the tile -> exercises the
    # partial last block (masked row writeback) path; same prepared params.
    rgb2 = jax.random.normal(k_x2, (3, 5, feat_size), jnp.float32)
    out2 = jax.block_until_ready(cl_enc_forward(rgb2, params))
    ref2 = _ref_forward(rgb2, w1, b1, w2, b2)
    assert out2.shape == rgb2.shape
    assert jnp.allclose(out2, ref2, atol=1e-5, rtol=1e-5), "mismatch (partial block)"

    print("KERNEL_OK")
</pallas_src>

<mosaic_0001>
module attributes {stable_mosaic.version = 11 : i64} {
  func.func @_feat_enc_kernel(%arg0: i32, %arg1: memref<16x32xf32, #tpu.memory_space<vmem>>, %arg2: memref<32x32xf32, #tpu.memory_space<vmem>>, %arg3: memref<1x32xf32, #tpu.memory_space<vmem>>, %arg4: memref<32x32xf32, #tpu.memory_space<vmem>>, %arg5: memref<1x32xf32, #tpu.memory_space<vmem>>, %arg6: memref<16x32xf32, #tpu.memory_space<vmem>>) attributes {dimension_semantics = [#tpu.dimension_semantics<parallel>], iteration_bounds = array<i64: 1>, scalar_prefetch = 0 : i64, scratch_operands = 0 : i64, tpu.core_type = #tpu.core_type<tc>, window_params = [{transform_indices = @transform_0, window_bounds = array<i64: 16, 32>}, {pipeline_mode = #tpu.pipeline_mode<synchronous>, transform_indices = @transform_1, window_bounds = array<i64: 32, 32>}, {pipeline_mode = #tpu.pipeline_mode<synchronous>, transform_indices = @transform_2, window_bounds = array<i64: 1, 32>}, {pipeline_mode = #tpu.pipeline_mode<synchronous>, transform_indices = @transform_3, window_bounds = array<i64: 32, 32>}, {pipeline_mode = #tpu.pipeline_mode<synchronous>, transform_indices = @transform_4, window_bounds = array<i64: 1, 32>}, {transform_indices = @transform_5, window_bounds = array<i64: 16, 32>}]} {
    %c0 = arith.constant 0 : index
    %c0_0 = arith.constant 0 : index
    %0 = vector.load %arg1[%c0, %c0_0] : memref<16x32xf32, #tpu.memory_space<vmem>>, vector<16x32xf32>
    %c0_1 = arith.constant 0 : index
    %c0_2 = arith.constant 0 : index
    %1 = vector.load %arg2[%c0_1, %c0_2] : memref<32x32xf32, #tpu.memory_space<vmem>>, vector<32x32xf32>
    %cst = arith.constant dense<0.000000e+00> : vector<16x32xf32>
    %2 = tpu.matmul %0, %1, %cst {dimension_numbers = #tpu.dot_dimension_numbers<[1], [0], [0], [1], [0, 0, 1, 1], [], []>} : vector<16x32xf32>, vector<32x32xf32>, vector<16x32xf32> -> vector<16x32xf32>
    %c0_3 = arith.constant 0 : index
    %c0_4 = arith.constant 0 : index
    %3 = vector.load %arg3[%c0_3, %c0_4] : memref<1x32xf32, #tpu.memory_space<vmem>>, vector<1x32xf32>
    %4 = vector.broadcast %3 : vector<1x32xf32> to vector<16x32xf32>
    %5 = arith.addf %2, %4 : vector<16x32xf32>
    %cst_5 = arith.constant 0.000000e+00 : f32
    %6 = vector.broadcast %cst_5 : f32 to vector<16x32xf32>
    %7 = arith.maximumf %5, %6 : vector<16x32xf32>
    %c0_6 = arith.constant 0 : index
    %c0_7 = arith.constant 0 : index
    %8 = vector.load %arg4[%c0_6, %c0_7] : memref<32x32xf32, #tpu.memory_space<vmem>>, vector<32x32xf32>
    %cst_8 = arith.constant dense<0.000000e+00> : vector<16x32xf32>
    %9 = tpu.matmul %7, %8, %cst_8 {dimension_numbers = #tpu.dot_dimension_numbers<[1], [0], [0], [1], [0, 0, 1, 1], [], []>} : vector<16x32xf32>, vector<32x32xf32>, vector<16x32xf32> -> vector<16x32xf32>
    %c0_9 = arith.constant 0 : index
    %c0_10 = arith.constant 0 : index
    %10 = vector.load %arg5[%c0_9, %c0_10] : memref<1x32xf32, #tpu.memory_space<vmem>>, vector<1x32xf32>
    %11 = vector.broadcast %10 : vector<1x32xf32> to vector<16x32xf32>
    %12 = arith.addf %9, %11 : vector<16x32xf32>
    %cst_11 = arith.constant 0.000000e+00 : f32
    %13 = vector.broadcast %cst_11 : f32 to vector<16x32xf32>
    %14 = arith.maximumf %12, %13 : vector<16x32xf32>
    %c0_12 = arith.constant 0 : index
    %c0_13 = arith.constant 0 : index
    %15 = vector.load %arg6[%c0_12, %c0_13] : memref<16x32xf32, #tpu.memory_space<vmem>>, vector<16x32xf32>
    tpu.vector_store %arg6[%c0_12, %c0_13], %14 {strides = array<i32>} : memref<16x32xf32, #tpu.memory_space<vmem>>, vector<16x32xf32>,
    return
  }
  func.func @transform_0(%arg0: i32) -> (i32, i32) {
    %c0_i32 = arith.constant 0 : i32
    %c0_i32_0 = arith.constant 0 : i32
    return %arg0, %c0_i32 : i32, i32
  }
  func.func @transform_1(%arg0: i32) -> (i32, i32) {
    %c0_i32 = arith.constant 0 : i32
    %c0_i32_0 = arith.constant 0 : i32
    %c0_i32_1 = arith.constant 0 : i32
    return %c0_i32, %c0_i32_0 : i32, i32
  }
  func.func @transform_2(%arg0: i32) -> (i32, i32) {
    %c0_i32 = arith.constant 0 : i32
    %c0_i32_0 = arith.constant 0 : i32
    %c0_i32_1 = arith.constant 0 : i32
    return %c0_i32, %c0_i32_0 : i32, i32
  }
  func.func @transform_3(%arg0: i32) -> (i32, i32) {
    %c0_i32 = arith.constant 0 : i32
    %c0_i32_0 = arith.constant 0 : i32
    %c0_i32_1 = arith.constant 0 : i32
    return %c0_i32, %c0_i32_0 : i32, i32
  }
  func.func @transform_4(%arg0: i32) -> (i32, i32) {
    %c0_i32 = arith.constant 0 : i32
    %c0_i32_0 = arith.constant 0 : i32
    %c0_i32_1 = arith.constant 0 : i32
    return %c0_i32, %c0_i32_0 : i32, i32
  }
  func.func @transform_5(%arg0: i32) -> (i32, i32) {
    %c0_i32 = arith.constant 0 : i32
    %c0_i32_0 = arith.constant 0 : i32
    return %arg0, %c0_i32 : i32, i32
  }
}

</mosaic_0001>

<llo_original>
// kernel: tpu_custom_call.1
$region0: #{tpu_custom_call.1}
  #allocation0 [shape = 'u32[]', space=smem, size = 0x4, offset = 0x4, fixed_abs, tag = 'smem constant byte address 0x4 - core index']
  #allocation1 [shape = 'u32[72,128]{1,0:T(1,128)}', space=vmem, size = 0x9000, scoped, tag = 'internal scratch']
  %s0 = inlined_call_operand.hbm [shape: f32[16,32], index: 0, kind: input, shape index: {}]
  %s1 = inlined_call_operand.hbm [shape: f32[32,32], index: 1, kind: input, shape index: {}]
  %s2 = inlined_call_operand.vmem [shape: f32[1,32], index: 2, kind: input, shape index: {}]
  %s3 = inlined_call_operand.hbm [shape: f32[32,32], index: 3, kind: input, shape index: {}]
  %s4 = inlined_call_operand.vmem [shape: f32[1,32], index: 4, kind: input, shape index: {}]
  %s5 = inlined_call_operand.hbm [shape: f32[16,32], index: 5, kind: output, shape index: {}]
  %s6 = sld [smem:[#allocation0]]
  $region42: #{tpu_custom_call.1} parent=0
    _
  %s8 = ssub.s32 1, %s6
  %s9 = scalar_select 0, %s8, %s6
  $region1: #{tpu_custom_call.1} parent=0
    #allocation2 [shape = 'u8[8192]{0}', space=vmem, size = 0x2000, scoped, tag = 'input window, operand 0, single buffered']
    #allocation3 [shape = 's32[1]{0}', space=sflag, size = 0x4, scoped, tag = 'scoped memory for tpu_custom_call.1']
    #allocation4 [shape = 's32[1]{0}', space=sflag, size = 0x4, scoped, tag = 'scoped memory for tpu_custom_call.1']
    #allocation5 [shape = 'u8[16384]{0}', space=vmem, size = 0x4000, scoped, tag = 'input window, operand 1, single buffered']
    #allocation6 [shape = 's32[1]{0}', space=sflag, size = 0x4, scoped, tag = 'scoped memory for tpu_custom_call.1']
    #allocation7 [shape = 'u8[16384]{0}', space=vmem, size = 0x4000, scoped, tag = 'input window, operand 3, single buffered']
    #allocation8 [shape = 'u8[8192]{0}', space=vmem, size = 0x2000, scoped, tag = 'output window, operand 0, single buffered']
    %10 = vsyncpa [#allocation3], 0
    %11 = vsyncpa [#allocation6], 0
    %12 = vsyncpa [#allocation4], 0
    // Predicated region
    $region2: #{tpu_custom_call.1} parent=1 // pred_check
      _
    $region3: #{tpu_custom_call.1} parent=1 // pred_check_branch
      %14 = sbr.rel (0) target = $region5
    $region4: #{tpu_custom_call.1} parent=1 // pred_region
      %16 = vsyncadd [#allocation3], 0
      %s17 = sshll.u32 %s0, 4
      %s18 = int_to_ptr.hbm [resolvable:$true] %s17
      %s19 = sshll.u32 [#allocation2], 4
      %s20 = int_to_ptr.vmem [resolvable:$true] %s19
      %25 = dma.hbm_to_vmem [thread:$0]  %s18, 256, %s20, [#allocation3], 128, 128, 8
    $region5: #{tpu_custom_call.1} parent=1 // pred_fallthru
      _
    // Predicated region
    $region6: #{tpu_custom_call.1} parent=1 // pred_check
      _
    $region7: #{tpu_custom_call.1} parent=1 // pred_check_branch
      %27 = sbr.rel (0) target = $region9
    $region8: #{tpu_custom_call.1} parent=1 // pred_region
      %29 = vsyncadd [#allocation6], 0
      %s30 = sshll.u32 %s1, 4
      %s31 = int_to_ptr.hbm [resolvable:$true] %s30
      %s32 = sshll.u32 [#allocation5], 4
      %s33 = int_to_ptr.vmem [resolvable:$true] %s32
      %38 = dma.hbm_to_vmem [thread:$0]  %s31, 512, %s33, [#allocation6], 128, 128, 8
    $region9: #{tpu_custom_call.1} parent=1 // pred_fallthru
      _
    // Predicated region
    $region10: #{tpu_custom_call.1} parent=1 // pred_check
      _
    $region11: #{tpu_custom_call.1} parent=1 // pred_check_branch
      %40 = sbr.rel (0) target = $region13
    $region12: #{tpu_custom_call.1} parent=1 // pred_region
      _
    $region13: #{tpu_custom_call.1} parent=1 // pred_fallthru
      _
    // Predicated region
    $region14: #{tpu_custom_call.1} parent=1 // pred_check
      _
    $region15: #{tpu_custom_call.1} parent=1 // pred_check_branch
      %42 = sbr.rel (0) target = $region17
    $region16: #{tpu_custom_call.1} parent=1 // pred_region
      %44 = vsyncadd [#allocation6], 0
      %s45 = sshll.u32 %s3, 4
      %s46 = int_to_ptr.hbm [resolvable:$true] %s45
      %s47 = sshll.u32 [#allocation7], 4
      %s48 = int_to_ptr.vmem [resolvable:$true] %s47
      %53 = dma.hbm_to_vmem [thread:$0]  %s46, 512, %s48, [#allocation6], 128, 128, 8
    $region17: #{tpu_custom_call.1} parent=1 // pred_fallthru
      _
    // Predicated region
    $region18: #{tpu_custom_call.1} parent=1 // pred_check
      _
    $region19: #{tpu_custom_call.1} parent=1 // pred_check_branch
      %55 = sbr.rel (0) target = $region21
    $region20: #{tpu_custom_call.1} parent=1 // pred_region
      _
    $region21: #{tpu_custom_call.1} parent=1 // pred_fallthru
      _
    // Predicated region
    $region22: #{tpu_custom_call.1} parent=1 // pred_check
      _
    $region23: #{tpu_custom_call.1} parent=1 // pred_check_branch
      %57 = sbr.rel (0) target = $region25
    $region24: #{tpu_custom_call.1} parent=1 // pred_region
      %59 = dma.done [#allocation3], 256
    $region25: #{tpu_custom_call.1} parent=1 // pred_fallthru
      _
    // Predicated region
    $region26: #{tpu_custom_call.1} parent=1 // pred_check
      _
    $region27: #{tpu_custom_call.1} parent=1 // pred_check_branch
      %61 = sbr.rel (0) target = $region29
    $region28: #{tpu_custom_call.1} parent=1 // pred_region
      %63 = dma.done [#allocation6], 512
    $region29: #{tpu_custom_call.1} parent=1 // pred_fallthru
      _
    // Predicated region
    $region30: #{tpu_custom_call.1} parent=1 // pred_check
      _
    $region31: #{tpu_custom_call.1} parent=1 // pred_check_branch
      %65 = sbr.rel (0) target = $region33
    $region32: #{tpu_custom_call.1} parent=1 // pred_region
      %67 = dma.done [#allocation6], 512
    $region33: #{tpu_custom_call.1} parent=1 // pred_fallthru
      _
    %v68 = vld [vmem:[#allocation2] sm:$0xff]
    %v69 = vld [vmem:[#allocation2 + $0x8] sm:$0xff]
    %v70 = vld [vmem:[#allocation5] sm:$0xff]
    %v71 = vld [vmem:[#allocation5 + $0x8] sm:$0xff]
    %v72 = vld [vmem:[#allocation5 + $0x10] sm:$0xff]
    %v73 = vld [vmem:[#allocation5 + $0x18] sm:$0xff]
    %v74 = vld [vmem:[%s2] sm:$0x1]
    %v76 = vperm.slane %v74, 0
    %vm78 = vcmask 261120
    %v80 = vsel %vm78, %v68, 0
    %v83 = vsel %vm78, %v69, 0
    %85 = vmatpush.msra.mxu0 0.0
    %86 = vmatpush.msra.mxu0 0.0
    %87 = vmatpush.msra.mxu0 0.0
    %88 = vmatpush.msra.mxu0 0.0
    %89 = vmatpush.msra.mxu0 0.0
    %90 = vmatpush.msra.mxu0 0.0
    %91 = vmatpush.msra.mxu0 0.0
    %92 = vmatpush.msra.mxu0 0.0
    %93 = vmatpush.msra.mxu0 0.0
    %94 = vmatpush.msra.mxu0 0.0
    %95 = vmatpush.msra.mxu0 0.0
    %96 = vmatpush.msra.mxu0 0.0
    %97 = vmatpush.msra.mxu0 %v73
    %98 = vmatpush.msra.mxu0 %v72
    %99 = vmatpush.msra.mxu0 %v71
    %100 = vmatpush.msra.mxu0 %v70
    %101 = vmatmul.f32.gmra.mxu0 %v80
    %v102 = vpop.f32.mrf.mxu0
    %v103 = vadd.f32 %v76, %v102
    %104 = vmatmul.f32.gmra.mxu0 %v83
    %v105 = vpop.f32.mrf.mxu0
    %v106 = vadd.f32 %v76, %v105
    %107 = vdwg.mxu0
    %v108 = vmax.f32 %v103, 0.0
    %v109 = vmax.f32 %v106, 0.0
    %v110 = vld [vmem:[#allocation7] sm:$0xff]
    %v111 = vld [vmem:[#allocation7 + $0x8] sm:$0xff]
    %v112 = vld [vmem:[#allocation7 + $0x10] sm:$0xff]
    %v113 = vld [vmem:[#allocation7 + $0x18] sm:$0xff]
    %v114 = vld [vmem:[%s4] sm:$0x1]
    %v116 = vperm.slane %v114, 0
    %v119 = vsel %vm78, %v108, 0
    %v122 = vsel %vm78, %v109, 0
    %124 = vmatpush.msra.mxu0 0.0
    %125 = vmatpush.msra.mxu0 0.0
    %126 = vmatpush.msra.mxu0 0.0
    %127 = vmatpush.msra.mxu0 0.0
    %128 = vmatpush.msra.mxu0 0.0
    %129 = vmatpush.msra.mxu0 0.0
    %130 = vmatpush.msra.mxu0 0.0
    %131 = vmatpush.msra.mxu0 0.0
    %132 = vmatpush.msra.mxu0 0.0
    %133 = vmatpush.msra.mxu0 0.0
    %134 = vmatpush.msra.mxu0 0.0
    %135 = vmatpush.msra.mxu0 0.0
    %136 = vmatpush.msra.mxu0 %v113
    %137 = vmatpush.msra.mxu0 %v112
    %138 = vmatpush.msra.mxu0 %v111
    %139 = vmatpush.msra.mxu0 %v110
    %140 = vmatmul.f32.gmra.mxu0 %v119
    %v141 = vpop.f32.mrf.mxu0
    %v142 = vadd.f32 %v116, %v141
    %143 = vmatmul.f32.gmra.mxu0 %v122
    %v144 = vpop.f32.mrf.mxu0
    %v145 = vadd.f32 %v116, %v144
    %146 = vdwg.mxu0
    %v147 = vmax.f32 %v142, 0.0
    %v148 = vmax.f32 %v145, 0.0
    %149 = vst.msk [vmem:[#allocation8] sm:$0xff] %vm78, %v147
    %150 = vst.msk [vmem:[#allocation8 + $0x8] sm:$0xff] %vm78, %v148
    // Predicated region
    $region34: #{tpu_custom_call.1} parent=1 // pred_check
      _
    $region35: #{tpu_custom_call.1} parent=1 // pred_check_branch
      %152 = sbr.rel (0) target = $region37
    $region36: #{tpu_custom_call.1} parent=1 // pred_region
      %154 = vsyncadd [#allocation4], 0
      %s155 = sshll.u32 [#allocation8], 4
      %s156 = int_to_ptr.vmem [resolvable:$true] %s155
      %s157 = sshll.u32 %s5, 4
      %s158 = int_to_ptr.hbm [resolvable:$true] %s157
      %163 = dma.vmem_to_hbm [thread:$0]  %s156, 256, %s158, [#allocation4], 128, 128, 8
    $region37: #{tpu_custom_call.1} parent=1 // pred_fallthru
      _
    // Predicated region
    $region38: #{tpu_custom_call.1} parent=1 // pred_check
      _
    $region39: #{tpu_custom_call.1} parent=1 // pred_check_branch
      %165 = sbr.rel (0) target = $region41
    $region40: #{tpu_custom_call.1} parent=1 // pred_region
      %167 = dma.done [#allocation4], 256
    $region41: #{tpu_custom_call.1} parent=1 // pred_fallthru
      _
    %168 = vsyncpa [#allocation3], 1
    %169 = vsyncpa [#allocation6], 1
    %170 = vsyncpa [#allocation4], 1

</llo_original>
